<compile_context>
chip_gen: v5e
topology: v5e:2x2
jax: 0.10.0
libtpu: 0.0.40
codegen_flags: <defaults>
</compile_context>

<pallas_src>
import math
import jax
import jax.numpy as jnp
from jax import lax
from jax.experimental import pallas as pl
from jax.experimental.pallas import tpu as pltpu

LN_EPS = 1e-12  # BertConfig.layer_norm_eps default


def _round_up(x, m):
    return (x + m - 1) // m * m


# ----------------------------- MLM head kernel ------------------------------
def mlm_head_kernel(x_ref, w1_ref, b1_ref, gamma_ref, beta_ref,
                    w2_ref, b2_ref, o_ref, h_ref):
    # Compute dense -> GELU -> LayerNorm once per row tile (inner vocab axis
    # reuses the result from the persistent VMEM scratch h_ref).
    @pl.when(pl.program_id(1) == 0)
    def _():
        # dense: x @ W1 + b1 (operands in native dtype, f32 accumulation)
        h = jnp.dot(x_ref[...], w1_ref[...],
                    preferred_element_type=jnp.float32)
        h = h + b1_ref[...].astype(jnp.float32)                  # [tm, H]

        # exact GELU (matches torch.nn.GELU() default): 0.5*x*(1+erf(x/sqrt(2)))
        h = 0.5 * h * (1.0 + lax.erf(h * (1.0 / math.sqrt(2.0))))

        # LayerNorm over hidden dim — single pass (sum and sum of squares).
        inv_h = 1.0 / h.shape[-1]
        mean = jnp.sum(h, axis=-1, keepdims=True) * inv_h
        mean_sq = jnp.sum(h * h, axis=-1, keepdims=True) * inv_h
        var = mean_sq - mean * mean
        h = (h - mean) * lax.rsqrt(var + LN_EPS)
        h = h * gamma_ref[...].astype(jnp.float32) \
              + beta_ref[...].astype(jnp.float32)                # [tm, H]

        h_ref[...] = h.astype(h_ref.dtype)

    # decoder: h @ W2[:, j*tn:(j+1)*tn] + bias tile
    logits = jnp.dot(h_ref[...], w2_ref[...],
                     preferred_element_type=jnp.float32)
    logits = logits + b2_ref[...].astype(jnp.float32)            # [tm, tn]
    o_ref[...] = logits.astype(o_ref.dtype)


# --------------------------------- wrapper -----------------------------------
def mlm_head(x2d, w1, b1, gamma, beta, w2, b2, *,
             tm=None, tn=None, vmem_limit_bytes=48 * 1024 * 1024):
    """x2d: [N, H] (N = B*S). Returns [N, V] logits in x2d.dtype."""
    N, H = x2d.shape
    V = w2.shape[1]

    # Tile sizes: multiples of the (8, 128) vreg tile, sized to keep the
    # double-buffered working set well under v7x's 64 MiB VMEM.
    if tm is None:
        tm = min(256, _round_up(N, 8))
    tm = min(tm, _round_up(N, 8))
    tm = _round_up(tm, 8)
    if tn is None:
        tn = min(2048, _round_up(V, 128))
    tn = min(tn, _round_up(V, 128))
    tn = _round_up(tn, 128)

    # Pad rows / vocab so arbitrary B*S and V (e.g. 30522) divide the tiles.
    Np = _round_up(N, tm)
    Vp = _round_up(V, tn)
    if Np != N:
        x2d = jnp.pad(x2d, ((0, Np - N), (0, 0)))
    if Vp != V:
        w2 = jnp.pad(w2, ((0, 0), (0, Vp - V)))
        b2 = jnp.pad(b2, ((0, 0), (0, Vp - V)))

    grid = (Np // tm, Vp // tn)

    # Advisory cost estimate so XLA schedules surrounding ops sensibly.
    itemsize_x = jnp.dtype(x2d.dtype).itemsize
    itemsize_w = jnp.dtype(w2.dtype).itemsize
    cost = pl.CostEstimate(
        flops=2 * Np * H * H + 2 * Np * H * Vp,
        transcendentals=Np * H,
        bytes_accessed=(Np * H * itemsize_x            # x in
                        + H * H * itemsize_w           # W1
                        + grid[0] * H * Vp * itemsize_w  # W2 re-streamed per row tile
                        + Np * Vp * itemsize_x),       # logits out
    )

    out_padded = pl.pallas_call(
        mlm_head_kernel,
        out_shape=jax.ShapeDtypeStruct((Np, Vp), x2d.dtype),
        grid_spec=pltpu.PrefetchScalarGridSpec(
            num_scalar_prefetch=0,
            grid=grid,
            in_specs=[
                pl.BlockSpec((tm, H), lambda i, j: (i, 0)),   # x row tile
                pl.BlockSpec((H, H), lambda i, j: (0, 0)),    # W1 (resident)
                pl.BlockSpec((1, H), lambda i, j: (0, 0)),    # b1
                pl.BlockSpec((1, H), lambda i, j: (0, 0)),    # LN gamma
                pl.BlockSpec((1, H), lambda i, j: (0, 0)),    # LN beta
                pl.BlockSpec((H, tn), lambda i, j: (0, j)),   # W2 vocab tile (streamed)
                pl.BlockSpec((1, tn), lambda i, j: (0, j)),   # decoder bias tile
            ],
            out_specs=pl.BlockSpec((tm, tn), lambda i, j: (i, j)),
            scratch_shapes=[pltpu.VMEM((tm, H), x2d.dtype)],  # persistent h
        ),
        compiler_params=pltpu.CompilerParams(
            dimension_semantics=("parallel", "arbitrary"),
            vmem_limit_bytes=vmem_limit_bytes),
        cost_estimate=cost,
    )(x2d, w1, b1, gamma, beta, w2, b2)

    return out_padded[:N, :V]


def bert_pretraining_heads(last_hidden_state, pooled_output, params):
    """Forward of BertPreTrainingHeads.

    last_hidden_state: [B, S, H], pooled_output: [B, H]
    returns (prediction_scores [B, S, V], seq_relationship_score [B, 2])
    """
    B, S, H = last_hidden_state.shape
    V = params["w_dec"].shape[1]
    x2d = last_hidden_state.reshape(B * S, H)
    scores2d = mlm_head(
        x2d,
        params["w_dense"], params["b_dense"],
        params["ln_gamma"], params["ln_beta"],
        params["w_dec"], params["b_dec"],
    )
    prediction_scores = scores2d.reshape(B, S, V)

    # NSP head: [B,H]x[H,2] is a few microseconds of work — a pallas_call's
    # launch/DMA overhead exceeds the compute, so keep it in plain XLA.
    nsp = jnp.dot(pooled_output, params["w_nsp"],
                  preferred_element_type=jnp.float32) + params["b_nsp"]
    seq_relationship_score = nsp.astype(pooled_output.dtype)
    return prediction_scores, seq_relationship_score


# ------------------------------ reference (JAX) ------------------------------
def reference_forward(last_hidden_state, pooled_output, params):
    x = last_hidden_state.astype(jnp.float32)
    h = x @ params["w_dense"].astype(jnp.float32) + params["b_dense"][0]
    h = 0.5 * h * (1.0 + lax.erf(h / jnp.sqrt(2.0)))
    mean = jnp.mean(h, axis=-1, keepdims=True)
    var = jnp.mean((h - mean) ** 2, axis=-1, keepdims=True)
    h = (h - mean) / jnp.sqrt(var + LN_EPS)
    h = h * params["ln_gamma"][0] + params["ln_beta"][0]
    pred = h @ params["w_dec"].astype(jnp.float32) + params["b_dec"][0]
    nsp = pooled_output.astype(jnp.float32) @ params["w_nsp"] + params["b_nsp"][0]
    return pred, nsp


def _make_params(key, H, V):
    keys = jax.random.split(key, 6)
    return {
        # dense: Linear(H, H)
        "w_dense": jax.random.normal(keys[0], (H, H), jnp.float32) * 0.02,
        "b_dense": jax.random.normal(keys[1], (1, H), jnp.float32) * 0.02,
        # LayerNorm(H)
        "ln_gamma": jnp.ones((1, H), jnp.float32),
        "ln_beta": jnp.zeros((1, H), jnp.float32),
        # decoder: Linear(H, V, bias=False) + Parameter(torch.zeros(V))
        "w_dec": jax.random.normal(keys[2], (H, V), jnp.float32) * 0.02,
        "b_dec": jnp.zeros((1, V), jnp.float32),
        # seq_relationship: Linear(H, 2)
        "w_nsp": jax.random.normal(keys[3], (H, 2), jnp.float32) * 0.02,
        "b_nsp": jax.random.normal(keys[4], (1, 2), jnp.float32) * 0.02,
    }


# ----------------------------------- main ------------------------------------
if __name__ == "__main__":
    key = jax.random.PRNGKey(0)
    k_par, k_hid, k_pool, k_par2, k_hid2, k_pool2 = jax.random.split(key, 6)

    # --- test 1: small, tile-aligned shapes ---
    B, S, H, V = 2, 8, 32, 128
    params = _make_params(k_par, H, V)
    last_hidden_state = jax.random.normal(k_hid, (B, S, H), jnp.float32)
    pooled_output = jax.random.normal(k_pool, (B, H), jnp.float32)

    pred, nsp = bert_pretraining_heads(last_hidden_state, pooled_output, params)
    jax.block_until_ready((pred, nsp))
    pred_ref, nsp_ref = reference_forward(last_hidden_state, pooled_output, params)
    assert pred.shape == (B, S, V) and nsp.shape == (B, 2)
    assert jnp.allclose(pred, pred_ref, atol=1e-4, rtol=1e-4)
    assert jnp.allclose(nsp, nsp_ref, atol=1e-4, rtol=1e-4)

    # --- test 2: non-tile-aligned rows / vocab (exercises padding path) ---
    B2, S2, H2, V2 = 2, 7, 32, 200
    params2 = _make_params(k_par2, H2, V2)
    last_hidden_state2 = jax.random.normal(k_hid2, (B2, S2, H2), jnp.float32)
    pooled_output2 = jax.random.normal(k_pool2, (B2, H2), jnp.float32)

    pred2, nsp2 = bert_pretraining_heads(last_hidden_state2, pooled_output2, params2)
    jax.block_until_ready((pred2, nsp2))
    pred2_ref, nsp2_ref = reference_forward(last_hidden_state2, pooled_output2, params2)
    assert pred2.shape == (B2, S2, V2) and nsp2.shape == (B2, 2)
    assert jnp.allclose(pred2, pred2_ref, atol=1e-4, rtol=1e-4)
    assert jnp.allclose(nsp2, nsp2_ref, atol=1e-4, rtol=1e-4)

    print("KERNEL_OK")
</pallas_src>

<mosaic_0001>
module attributes {stable_mosaic.version = 11 : i64} {
  func.func @mlm_head_kernel(%arg0: i32, %arg1: i32, %arg2: memref<16x32xf32, #tpu.memory_space<vmem>>, %arg3: memref<32x32xf32, #tpu.memory_space<vmem>>, %arg4: memref<1x32xf32, #tpu.memory_space<vmem>>, %arg5: memref<1x32xf32, #tpu.memory_space<vmem>>, %arg6: memref<1x32xf32, #tpu.memory_space<vmem>>, %arg7: memref<32x128xf32, #tpu.memory_space<vmem>>, %arg8: memref<1x128xf32, #tpu.memory_space<vmem>>, %arg9: memref<16x128xf32, #tpu.memory_space<vmem>>, %arg10: memref<16x32xf32, #tpu.memory_space<vmem>>) attributes {dimension_semantics = [#tpu.dimension_semantics<parallel>, #tpu.dimension_semantics<arbitrary>], iteration_bounds = array<i64: 1, 1>, scalar_prefetch = 0 : i64, scratch_operands = 1 : i64, tpu.core_type = #tpu.core_type<tc>, window_params = [{transform_indices = @transform_0, window_bounds = array<i64: 16, 32>}, {pipeline_mode = #tpu.pipeline_mode<synchronous>, transform_indices = @transform_1, window_bounds = array<i64: 32, 32>}, {pipeline_mode = #tpu.pipeline_mode<synchronous>, transform_indices = @transform_2, window_bounds = array<i64: 1, 32>}, {pipeline_mode = #tpu.pipeline_mode<synchronous>, transform_indices = @transform_3, window_bounds = array<i64: 1, 32>}, {pipeline_mode = #tpu.pipeline_mode<synchronous>, transform_indices = @transform_4, window_bounds = array<i64: 1, 32>}, {transform_indices = @transform_5, window_bounds = array<i64: 32, 128>}, {transform_indices = @transform_6, window_bounds = array<i64: 1, 128>}, {transform_indices = @transform_7, window_bounds = array<i64: 16, 128>}]} {
    %c0_i32 = arith.constant 0 : i32
    %0 = arith.cmpi eq, %arg1, %c0_i32 : i32
    %1 = arith.extui %0 : i1 to i32
    %c0_i32_0 = arith.constant 0 : i32
    %2 = arith.cmpi ne, %1, %c0_i32_0 : i32
    scf.if %2 {
      %c0_8 = arith.constant 0 : index
      %c0_9 = arith.constant 0 : index
      %10 = vector.load %arg2[%c0_8, %c0_9] : memref<16x32xf32, #tpu.memory_space<vmem>>, vector<16x32xf32>
      %c0_10 = arith.constant 0 : index
      %c0_11 = arith.constant 0 : index
      %11 = vector.load %arg3[%c0_10, %c0_11] : memref<32x32xf32, #tpu.memory_space<vmem>>, vector<32x32xf32>
      %cst_12 = arith.constant dense<0.000000e+00> : vector<16x32xf32>
      %12 = tpu.matmul %10, %11, %cst_12 {dimension_numbers = #tpu.dot_dimension_numbers<[1], [0], [0], [1], [0, 0, 1, 1], [], []>} : vector<16x32xf32>, vector<32x32xf32>, vector<16x32xf32> -> vector<16x32xf32>
      %c0_13 = arith.constant 0 : index
      %c0_14 = arith.constant 0 : index
      %13 = vector.load %arg4[%c0_13, %c0_14] : memref<1x32xf32, #tpu.memory_space<vmem>>, vector<1x32xf32>
      %14 = vector.broadcast %13 : vector<1x32xf32> to vector<16x32xf32>
      %15 = arith.addf %12, %14 : vector<16x32xf32>
      %cst_15 = arith.constant 5.000000e-01 : f32
      %16 = vector.broadcast %cst_15 : f32 to vector<16x32xf32>
      %17 = arith.mulf %16, %15 : vector<16x32xf32>
      %cst_16 = arith.constant 0.707106769 : f32
      %18 = vector.broadcast %cst_16 : f32 to vector<16x32xf32>
      %19 = arith.mulf %15, %18 : vector<16x32xf32>
      %20 = math.erf %19 : vector<16x32xf32>
      %cst_17 = arith.constant 1.000000e+00 : f32
      %21 = vector.broadcast %cst_17 : f32 to vector<16x32xf32>
      %22 = arith.addf %21, %20 : vector<16x32xf32>
      %23 = arith.mulf %17, %22 : vector<16x32xf32>
      %cst_18 = arith.constant dense<0.000000e+00> : vector<16xf32>
      %24 = vector.multi_reduction <add>, %23, %cst_18 [1] : vector<16x32xf32> to vector<16xf32>
      %25 = vector.shape_cast %24 : vector<16xf32> to vector<16x1xf32>
      %cst_19 = arith.constant 3.125000e-02 : f32
      %26 = vector.broadcast %cst_19 : f32 to vector<16x1xf32>
      %27 = arith.mulf %25, %26 : vector<16x1xf32>
      %28 = arith.mulf %23, %23 : vector<16x32xf32>
      %cst_20 = arith.constant dense<0.000000e+00> : vector<16xf32>
      %29 = vector.multi_reduction <add>, %28, %cst_20 [1] : vector<16x32xf32> to vector<16xf32>
      %30 = vector.shape_cast %29 : vector<16xf32> to vector<16x1xf32>
      %cst_21 = arith.constant 3.125000e-02 : f32
      %31 = vector.broadcast %cst_21 : f32 to vector<16x1xf32>
      %32 = arith.mulf %30, %31 : vector<16x1xf32>
      %33 = arith.mulf %27, %27 : vector<16x1xf32>
      %34 = arith.subf %32, %33 : vector<16x1xf32>
      %35 = vector.broadcast %27 : vector<16x1xf32> to vector<16x32xf32>
      %36 = arith.subf %23, %35 : vector<16x32xf32>
      %cst_22 = arith.constant 9.99999996E-13 : f32
      %37 = vector.broadcast %cst_22 : f32 to vector<16x1xf32>
      %38 = arith.addf %34, %37 : vector<16x1xf32>
      %39 = math.rsqrt %38 : vector<16x1xf32>
      %40 = vector.broadcast %39 : vector<16x1xf32> to vector<16x32xf32>
      %41 = arith.mulf %36, %40 : vector<16x32xf32>
      %c0_23 = arith.constant 0 : index
      %c0_24 = arith.constant 0 : index
      %42 = vector.load %arg5[%c0_23, %c0_24] : memref<1x32xf32, #tpu.memory_space<vmem>>, vector<1x32xf32>
      %43 = vector.broadcast %42 : vector<1x32xf32> to vector<16x32xf32>
      %44 = arith.mulf %41, %43 : vector<16x32xf32>
      %c0_25 = arith.constant 0 : index
      %c0_26 = arith.constant 0 : index
      %45 = vector.load %arg6[%c0_25, %c0_26] : memref<1x32xf32, #tpu.memory_space<vmem>>, vector<1x32xf32>
      %46 = vector.broadcast %45 : vector<1x32xf32> to vector<16x32xf32>
      %47 = arith.addf %44, %46 : vector<16x32xf32>
      %c0_27 = arith.constant 0 : index
      %c0_28 = arith.constant 0 : index
      %48 = vector.load %arg10[%c0_27, %c0_28] : memref<16x32xf32, #tpu.memory_space<vmem>>, vector<16x32xf32>
      tpu.vector_store %arg10[%c0_27, %c0_28], %47 {strides = array<i32>} : memref<16x32xf32, #tpu.memory_space<vmem>>, vector<16x32xf32>,
    } else {
    }
    %c0 = arith.constant 0 : index
    %c0_1 = arith.constant 0 : index
    %3 = vector.load %arg10[%c0, %c0_1] : memref<16x32xf32, #tpu.memory_space<vmem>>, vector<16x32xf32>
    %c0_2 = arith.constant 0 : index
    %c0_3 = arith.constant 0 : index
    %4 = vector.load %arg7[%c0_2, %c0_3] : memref<32x128xf32, #tpu.memory_space<vmem>>, vector<32x128xf32>
    %cst = arith.constant dense<0.000000e+00> : vector<16x128xf32>
    %5 = tpu.matmul %3, %4, %cst {dimension_numbers = #tpu.dot_dimension_numbers<[1], [0], [0], [1], [0, 0, 1, 1], [], []>} : vector<16x32xf32>, vector<32x128xf32>, vector<16x128xf32> -> vector<16x128xf32>
    %c0_4 = arith.constant 0 : index
    %c0_5 = arith.constant 0 : index
    %6 = vector.load %arg8[%c0_4, %c0_5] : memref<1x128xf32, #tpu.memory_space<vmem>>, vector<1x128xf32>
    %7 = vector.broadcast %6 : vector<1x128xf32> to vector<16x128xf32>
    %8 = arith.addf %5, %7 : vector<16x128xf32>
    %c0_6 = arith.constant 0 : index
    %c0_7 = arith.constant 0 : index
    %9 = vector.load %arg9[%c0_6, %c0_7] : memref<16x128xf32, #tpu.memory_space<vmem>>, vector<16x128xf32>
    tpu.vector_store %arg9[%c0_6, %c0_7], %8 {strides = array<i32>} : memref<16x128xf32, #tpu.memory_space<vmem>>, vector<16x128xf32>,
    return
  }
  func.func @transform_0(%arg0: i32, %arg1: i32) -> (i32, i32) {
    %c0_i32 = arith.constant 0 : i32
    %c0_i32_0 = arith.constant 0 : i32
    return %arg0, %c0_i32 : i32, i32
  }
  func.func @transform_1(%arg0: i32, %arg1: i32) -> (i32, i32) {
    %c0_i32 = arith.constant 0 : i32
    %c0_i32_0 = arith.constant 0 : i32
    %c0_i32_1 = arith.constant 0 : i32
    return %c0_i32, %c0_i32_0 : i32, i32
  }
  func.func @transform_2(%arg0: i32, %arg1: i32) -> (i32, i32) {
    %c0_i32 = arith.constant 0 : i32
    %c0_i32_0 = arith.constant 0 : i32
    %c0_i32_1 = arith.constant 0 : i32
    return %c0_i32, %c0_i32_0 : i32, i32
  }
  func.func @transform_3(%arg0: i32, %arg1: i32) -> (i32, i32) {
    %c0_i32 = arith.constant 0 : i32
    %c0_i32_0 = arith.constant 0 : i32
    %c0_i32_1 = arith.constant 0 : i32
    return %c0_i32, %c0_i32_0 : i32, i32
  }
  func.func @transform_4(%arg0: i32, %arg1: i32) -> (i32, i32) {
    %c0_i32 = arith.constant 0 : i32
    %c0_i32_0 = arith.constant 0 : i32
    %c0_i32_1 = arith.constant 0 : i32
    return %c0_i32, %c0_i32_0 : i32, i32
  }
  func.func @transform_5(%arg0: i32, %arg1: i32) -> (i32, i32) {
    %c0_i32 = arith.constant 0 : i32
    %c0_i32_0 = arith.constant 0 : i32
    return %c0_i32, %arg1 : i32, i32
  }
  func.func @transform_6(%arg0: i32, %arg1: i32) -> (i32, i32) {
    %c0_i32 = arith.constant 0 : i32
    %c0_i32_0 = arith.constant 0 : i32
    return %c0_i32, %arg1 : i32, i32
  }
  func.func @transform_7(%arg0: i32, %arg1: i32) -> (i32, i32) {
    %c0_i32 = arith.constant 0 : i32
    return %arg0, %arg1 : i32, i32
  }
}

</mosaic_0001>

<llo_original>
// kernel: tpu_custom_call.1
$region0: #{tpu_custom_call.1}
  #allocation0 [shape = 'u32[]', space=smem, size = 0x4, offset = 0x4, fixed_abs, tag = 'smem constant byte address 0x4 - core index']
  #allocation1 [shape = 'u32[72,128]{1,0:T(1,128)}', space=vmem, size = 0x9000, scoped, tag = 'internal scratch']
  #allocation2 [shape = 'f32[16,32]{1,0:T(8,128)}', space=vmem, size = 0x2000, scoped, tag = 'scratch operand']
  %s0 = inlined_call_operand.hbm [shape: f32[16,32], index: 0, kind: input, shape index: {}]
  %s1 = inlined_call_operand.hbm [shape: f32[32,32], index: 1, kind: input, shape index: {}]
  %s2 = inlined_call_operand.vmem [shape: f32[1,32], index: 2, kind: input, shape index: {}]
  %s3 = inlined_call_operand.vmem [shape: f32[1,32], index: 3, kind: input, shape index: {}]
  %s4 = inlined_call_operand.vmem [shape: f32[1,32], index: 4, kind: input, shape index: {}]
  %s5 = inlined_call_operand.hbm [shape: f32[32,128], index: 5, kind: input, shape index: {}]
  %s6 = inlined_call_operand.vmem [shape: f32[1,128], index: 6, kind: input, shape index: {}]
  %s7 = inlined_call_operand.hbm [shape: f32[16,128], index: 7, kind: output, shape index: {}]
  %s8 = sld [smem:[#allocation0]]
  $region54: #{tpu_custom_call.1} parent=0
    _
  %s10 = ssub.s32 1, %s8
  %s11 = scalar_select 0, %s10, %s8
  $region1: #{tpu_custom_call.1} parent=0
    #allocation3 [shape = 'u8[8192]{0}', space=vmem, size = 0x2000, scoped, tag = 'input window, operand 0, single buffered']
    #allocation4 [shape = 's32[1]{0}', space=sflag, size = 0x4, scoped, tag = 'scoped memory for tpu_custom_call.1']
    #allocation5 [shape = 's32[1]{0}', space=sflag, size = 0x4, scoped, tag = 'scoped memory for tpu_custom_call.1']
    #allocation6 [shape = 'u8[16384]{0}', space=vmem, size = 0x4000, scoped, tag = 'input window, operand 1, single buffered']
    #allocation7 [shape = 's32[1]{0}', space=sflag, size = 0x4, scoped, tag = 'scoped memory for tpu_custom_call.1']
    #allocation8 [shape = 'u8[16384]{0}', space=vmem, size = 0x4000, scoped, tag = 'input window, operand 5, single buffered']
    #allocation9 [shape = 'u8[8192]{0}', space=vmem, size = 0x2000, scoped, tag = 'output window, operand 0, single buffered']
    %12 = vsyncpa [#allocation4], 0
    %13 = vsyncpa [#allocation7], 0
    %14 = vsyncpa [#allocation5], 0
    // Predicated region
    $region2: #{tpu_custom_call.1} parent=1 // pred_check
      _
    $region3: #{tpu_custom_call.1} parent=1 // pred_check_branch
      %16 = sbr.rel (0) target = $region5
    $region4: #{tpu_custom_call.1} parent=1 // pred_region
      %18 = vsyncadd [#allocation4], 0
      %s19 = sshll.u32 %s0, 4
      %s20 = int_to_ptr.hbm [resolvable:$true] %s19
      %s21 = sshll.u32 [#allocation3], 4
      %s22 = int_to_ptr.vmem [resolvable:$true] %s21
      %27 = dma.hbm_to_vmem [thread:$0]  %s20, 256, %s22, [#allocation4], 128, 128, 8
    $region5: #{tpu_custom_call.1} parent=1 // pred_fallthru
      _
    // Predicated region
    $region6: #{tpu_custom_call.1} parent=1 // pred_check
      _
    $region7: #{tpu_custom_call.1} parent=1 // pred_check_branch
      %29 = sbr.rel (0) target = $region9
    $region8: #{tpu_custom_call.1} parent=1 // pred_region
      %31 = vsyncadd [#allocation7], 0
      %s32 = sshll.u32 %s1, 4
      %s33 = int_to_ptr.hbm [resolvable:$true] %s32
      %s34 = sshll.u32 [#allocation6], 4
      %s35 = int_to_ptr.vmem [resolvable:$true] %s34
      %40 = dma.hbm_to_vmem [thread:$0]  %s33, 512, %s35, [#allocation7], 128, 128, 8
    $region9: #{tpu_custom_call.1} parent=1 // pred_fallthru
      _
    // Predicated region
    $region10: #{tpu_custom_call.1} parent=1 // pred_check
      _
    $region11: #{tpu_custom_call.1} parent=1 // pred_check_branch
      %42 = sbr.rel (0) target = $region13
    $region12: #{tpu_custom_call.1} parent=1 // pred_region
      _
    $region13: #{tpu_custom_call.1} parent=1 // pred_fallthru
      _
    // Predicated region
    $region14: #{tpu_custom_call.1} parent=1 // pred_check
      _
    $region15: #{tpu_custom_call.1} parent=1 // pred_check_branch
      %44 = sbr.rel (0) target = $region17
    $region16: #{tpu_custom_call.1} parent=1 // pred_region
      _
    $region17: #{tpu_custom_call.1} parent=1 // pred_fallthru
      _
    // Predicated region
    $region18: #{tpu_custom_call.1} parent=1 // pred_check
      _
    $region19: #{tpu_custom_call.1} parent=1 // pred_check_branch
      %46 = sbr.rel (0) target = $region21
    $region20: #{tpu_custom_call.1} parent=1 // pred_region
      _
    $region21: #{tpu_custom_call.1} parent=1 // pred_fallthru
      _
    // Predicated region
    $region22: #{tpu_custom_call.1} parent=1 // pred_check
      _
    $region23: #{tpu_custom_call.1} parent=1 // pred_check_branch
      %48 = sbr.rel (0) target = $region25
    $region24: #{tpu_custom_call.1} parent=1 // pred_region
      %50 = vsyncadd [#allocation7], 0
      %s51 = sshll.u32 %s5, 4
      %s52 = int_to_ptr.hbm [resolvable:$true] %s51
      %s53 = sshll.u32 [#allocation8], 4
      %s54 = int_to_ptr.vmem [resolvable:$true] %s53
      %59 = dma.hbm_to_vmem [thread:$0]  %s52, 512, %s54, [#allocation7], 128, 128, 8
    $region25: #{tpu_custom_call.1} parent=1 // pred_fallthru
      _
    // Predicated region
    $region26: #{tpu_custom_call.1} parent=1 // pred_check
      _
    $region27: #{tpu_custom_call.1} parent=1 // pred_check_branch
      %61 = sbr.rel (0) target = $region29
    $region28: #{tpu_custom_call.1} parent=1 // pred_region
      _
    $region29: #{tpu_custom_call.1} parent=1 // pred_fallthru
      _
    // Predicated region
    $region30: #{tpu_custom_call.1} parent=1 // pred_check
      _
    $region31: #{tpu_custom_call.1} parent=1 // pred_check_branch
      %63 = sbr.rel (0) target = $region33
    $region32: #{tpu_custom_call.1} parent=1 // pred_region
      %65 = dma.done [#allocation4], 256
    $region33: #{tpu_custom_call.1} parent=1 // pred_fallthru
      _
    // Predicated region
    $region34: #{tpu_custom_call.1} parent=1 // pred_check
      _
    $region35: #{tpu_custom_call.1} parent=1 // pred_check_branch
      %67 = sbr.rel (0) target = $region37
    $region36: #{tpu_custom_call.1} parent=1 // pred_region
      %69 = dma.done [#allocation7], 512
    $region37: #{tpu_custom_call.1} parent=1 // pred_fallthru
      _
    // Predicated region
    $region38: #{tpu_custom_call.1} parent=1 // pred_check
      _
    $region39: #{tpu_custom_call.1} parent=1 // pred_check_branch
      %71 = sbr.rel (0) target = $region41
    $region40: #{tpu_custom_call.1} parent=1 // pred_region
      %73 = dma.done [#allocation7], 512
    $region41: #{tpu_custom_call.1} parent=1 // pred_fallthru
      _
    %p74 = scmp.eq.s32.totalorder 0, 0
    // Predicated region
    $region42: #{tpu_custom_call.1} parent=1 // pred_check
      %p75 = pneg %p74
    $region43: #{tpu_custom_call.1} parent=1 // pred_check_branch
      %77 = sbr.rel (%p75) target = $region45
    $region44: #{tpu_custom_call.1} parent=1 // pred_region
      %v78 = vld [vmem:[#allocation3] sm:$0xff]
      %v79 = vld [vmem:[#allocation3 + $0x8] sm:$0xff]
      %v80 = vld [vmem:[#allocation6] sm:$0xff]
      %v81 = vld [vmem:[#allocation6 + $0x8] sm:$0xff]
      %v82 = vld [vmem:[#allocation6 + $0x10] sm:$0xff]
      %v83 = vld [vmem:[#allocation6 + $0x18] sm:$0xff]
      %v84 = vld [vmem:[%s2] sm:$0x1]
      %v86 = vperm.slane %v84, 0
      %vm88 = vcmask 261120
      %v90 = vsel %vm88, %v78, 0
      %v93 = vsel %vm88, %v79, 0
      %95 = vmatpush.msra.mxu0 0.0
      %96 = vmatpush.msra.mxu0 0.0
      %97 = vmatpush.msra.mxu0 0.0
      %98 = vmatpush.msra.mxu0 0.0
      %99 = vmatpush.msra.mxu0 0.0
      %100 = vmatpush.msra.mxu0 0.0
      %101 = vmatpush.msra.mxu0 0.0
      %102 = vmatpush.msra.mxu0 0.0
      %103 = vmatpush.msra.mxu0 0.0
      %104 = vmatpush.msra.mxu0 0.0
      %105 = vmatpush.msra.mxu0 0.0
      %106 = vmatpush.msra.mxu0 0.0
      %107 = vmatpush.msra.mxu0 %v83
      %108 = vmatpush.msra.mxu0 %v82
      %109 = vmatpush.msra.mxu0 %v81
      %110 = vmatpush.msra.mxu0 %v80
      %111 = vmatmul.f32.gmra.mxu0 %v90
      %v112 = vpop.f32.mrf.mxu0
      %v113 = vadd.f32 %v86, %v112
      %114 = vmatmul.f32.gmra.mxu0 %v93
      %v115 = vpop.f32.mrf.mxu0
      %v116 = vadd.f32 %v86, %v115
      %117 = vdwg.mxu0
      %v118 = vmul.f32 %v113, 0.5
      %v119 = vmul.f32 %v116, 0.5
      %v120 = vmul.f32 %v113, 0.70710677
      %v121 = vmul.f32 %v116, 0.70710677
      %v122 = vmul.f32 %v120, %v120
      %v123 = vmin.f32 16.0, %v122
      %v124 = vmul.f32 %v123, 2.1237322e-06
      %v125 = vadd.f32 %v124, 0.00028619796
      %v126 = vmul.f32 %v123, %v125
      %v127 = vadd.f32 %v126, 0.0036580483
      %v128 = vmul.f32 %v123, %v127
      %v129 = vadd.f32 %v128, 0.05243302
      %v130 = vmul.f32 %v123, %v129
      %v131 = vadd.f32 %v130, 0.18741608
      %v132 = vmul.f32 %v123, %v131
      %v133 = vadd.f32 %v132, 1.1283791
      %v134 = vmul.f32 %v120, %v133
      %v135 = vmul.f32 %v123, 3.8918573e-05
      %v136 = vadd.f32 %v135, 0.001143296
      %v137 = vmul.f32 %v123, %v136
      %v138 = vadd.f32 %v137, 0.014752088
      %v139 = vmul.f32 %v123, %v138
      %v140 = vadd.f32 %v139, 0.112945676
      %v141 = vmul.f32 %v123, %v140
      %v142 = vadd.f32 %v141, 0.4994258
      %v143 = vmul.f32 %v123, %v142
      %v144 = vadd.f32 %v143, 1.0
      %v145 = vrcp.pop %v144
      %v146 = vmul.f32 %v144, %v145
      %v147 = vsub.f32 1.0, %v146
      %v148 = vmul.f32 %v145, %v147
      %v149 = vadd.f32 %v145, %v148
      %vm150 = vweird.f32 %v144
      %vm151 = vweird.f32 %v145
      %vm152 = vmor %vm150, %vm151
      %v153 = vsel %vm152, %v145, %v149
      %v154 = vand.u32 2147483647, %v144
      %vm155 = vcmp.eq.f32.partialorder %v154, 8.507059e+37
      %v156 = vand.u32 %v144, 2147483648
      %v157 = vor.u32 1.1754944e-38, %v156
      %v158 = vsel %vm155, %v157, %v153
      %v159 = vmul.f32 %v134, %v158
      %v160 = vmin.f32 %v159, 1.0
      %v161 = vmax.f32 %v160, -1.0
      %v162 = vmul.f32 %v121, %v121
      %v163 = vmin.f32 16.0, %v162
      %v164 = vmul.f32 %v163, 2.1237322e-06
      %v165 = vadd.f32 %v164, 0.00028619796
      %v166 = vmul.f32 %v163, %v165
      %v167 = vadd.f32 %v166, 0.0036580483
      %v168 = vmul.f32 %v163, %v167
      %v169 = vadd.f32 %v168, 0.05243302
      %v170 = vmul.f32 %v163, %v169
      %v171 = vadd.f32 %v170, 0.18741608
      %v172 = vmul.f32 %v163, %v171
      %v173 = vadd.f32 %v172, 1.1283791
      %v174 = vmul.f32 %v121, %v173
      %v175 = vmul.f32 %v163, 3.8918573e-05
      %v176 = vadd.f32 %v175, 0.001143296
      %v177 = vmul.f32 %v163, %v176
      %v178 = vadd.f32 %v177, 0.014752088
      %v179 = vmul.f32 %v163, %v178
      %v180 = vadd.f32 %v179, 0.112945676
      %v181 = vmul.f32 %v163, %v180
      %v182 = vadd.f32 %v181, 0.4994258
      %v183 = vmul.f32 %v163, %v182
      %v184 = vadd.f32 %v183, 1.0
      %v185 = vrcp.pop %v184
      %v186 = vmul.f32 %v184, %v185
      %v187 = vsub.f32 1.0, %v186
      %v188 = vmul.f32 %v185, %v187
      %v189 = vadd.f32 %v185, %v188
      %vm190 = vweird.f32 %v184
      %vm191 = vweird.f32 %v185
      %vm192 = vmor %vm190, %vm191
      %v193 = vsel %vm192, %v185, %v189
      %v194 = vand.u32 2147483647, %v184
      %vm195 = vcmp.eq.f32.partialorder %v194, 8.507059e+37
      %v196 = vand.u32 %v184, 2147483648
      %v197 = vor.u32 1.1754944e-38, %v196
      %v198 = vsel %vm195, %v197, %v193
      %v199 = vmul.f32 %v174, %v198
      %v200 = vmin.f32 %v199, 1.0
      %v201 = vmax.f32 %v200, -1.0
      %v202 = vadd.f32 %v161, 1.0
      %v203 = vadd.f32 %v201, 1.0
      %v204 = vmul.f32 %v118, %v202
      %v205 = vmul.f32 %v119, %v203
      %v206 = vsel %vm88, %v204, 0.0
      %207 = vadd.xlane.f32.xlu0 %v206
      %v208 = vpop.xlane.xlu0 %207
      %v209 = vsel %vm88, %v205, 0.0
      %210 = vadd.xlane.f32.xlu0 %v209
      %v211 = vpop.xlane.xlu0 %210
      %v212 = vmul.f32 %v208, 0.03125
      %v213 = vmul.f32 %v211, 0.03125
      %v214 = vmul.f32 %v204, %v204
      %v215 = vmul.f32 %v205, %v205
      %v216 = vsel %vm88, %v214, 0.0
      %217 = vadd.xlane.f32.xlu0 %v216
      %v218 = vpop.xlane.xlu0 %217
      %v219 = vsel %vm88, %v215, 0.0
      %220 = vadd.xlane.f32.xlu0 %v219
      %v221 = vpop.xlane.xlu0 %220
      %v222 = vmul.f32 %v218, 0.03125
      %v223 = vmul.f32 %v221, 0.03125
      %v224 = vmul.f32 %v212, %v212
      %v225 = vmul.f32 %v213, %v213
      %v226 = vsub.f32 %v222, %v224
      %v227 = vsub.f32 %v223, %v225
      %v228 = vsub.f32 %v204, %v212
      %v229 = vsub.f32 %v205, %v213
      %v230 = vadd.f32 %v226, 1e-12
      %v231 = vadd.f32 %v227, 1e-12
      %v232 = vrsqrt.pop %v230
      %v233 = vmul.f32 %v232, %v230
      %v234 = vmul.f32 %v233, %v232
      %v235 = vmul.f32 0.5, %v234
      %v236 = vsub.f32 1.5, %v235
      %v237 = vmul.f32 %v232, %v236
      %vm238 = vweird.f32 %v230
      %vm239 = vweird.f32 %v232
      %vm240 = vmor %vm238, %vm239
      %v241 = vsel %vm240, %v232, %v237
      %v242 = vrsqrt.pop %v231
      %v243 = vmul.f32 %v242, %v231
      %v244 = vmul.f32 %v243, %v242
      %v245 = vmul.f32 0.5, %v244
      %v246 = vsub.f32 1.5, %v245
      %v247 = vmul.f32 %v242, %v246
      %vm248 = vweird.f32 %v231
      %vm249 = vweird.f32 %v242
      %vm250 = vmor %vm248, %vm249
      %v251 = vsel %vm250, %v242, %v247
      %v252 = vmul.f32 %v228, %v241
      %v253 = vmul.f32 %v229, %v251
      %v254 = vld [vmem:[%s3] sm:$0x1]
      %v256 = vperm.slane %v254, 0
      %v258 = vmul.f32 %v252, %v256
      %v259 = vmul.f32 %v253, %v256
      %v260 = vld [vmem:[%s4] sm:$0x1]
      %v262 = vperm.slane %v260, 0
      %v264 = vadd.f32 %v258, %v262
      %v265 = vadd.f32 %v259, %v262
      %266 = vst.msk [vmem:[#allocation2] sm:$0xff] %vm88, %v264
      %267 = vst.msk [vmem:[#allocation2 + $0x8] sm:$0xff] %vm88, %v265
    $region45: #{tpu_custom_call.1} parent=1 // pred_fallthru
      _
    %v268 = vld [vmem:[#allocation2] sm:$0xff]
    %v269 = vld [vmem:[#allocation2 + $0x8] sm:$0xff]
    %v270 = vld [vmem:[#allocation8] sm:$0xff]
    %v271 = vld [vmem:[#allocation8 + $0x8] sm:$0xff]
    %v272 = vld [vmem:[#allocation8 + $0x10] sm:$0xff]
    %v273 = vld [vmem:[#allocation8 + $0x18] sm:$0xff]
    %v274 = vld [vmem:[%s6] sm:$0x1]
    %v276 = vperm.slane %v274, 0
    %vm278 = vcmask 261120
    %v280 = vsel %vm278, %v268, 0
    %v283 = vsel %vm278, %v269, 0
    %285 = vmatpush.msra.mxu0 0.0
    %286 = vmatpush.msra.mxu0 0.0
    %287 = vmatpush.msra.mxu0 0.0
    %288 = vmatpush.msra.mxu0 0.0
    %289 = vmatpush.msra.mxu0 0.0
    %290 = vmatpush.msra.mxu0 0.0
    %291 = vmatpush.msra.mxu0 0.0
    %292 = vmatpush.msra.mxu0 0.0
    %293 = vmatpush.msra.mxu0 0.0
    %294 = vmatpush.msra.mxu0 0.0
    %295 = vmatpush.msra.mxu0 0.0
    %296 = vmatpush.msra.mxu0 0.0
    %297 = vmatpush.msra.mxu0 %v273
    %298 = vmatpush.msra.mxu0 %v272
    %299 = vmatpush.msra.mxu0 %v271
    %300 = vmatpush.msra.mxu0 %v270
    %301 = vmatmul.f32.gmra.mxu0 %v280
    %v302 = vpop.f32.mrf.mxu0
    %v303 = vadd.f32 %v276, %v302
    %304 = vmatmul.f32.gmra.mxu0 %v283
    %v305 = vpop.f32.mrf.mxu0
    %v306 = vadd.f32 %v276, %v305
    %307 = vdwg.mxu0
    %308 = vst [vmem:[#allocation9] sm:$0xff] %v303
    %309 = vst [vmem:[#allocation9 + $0x8] sm:$0xff] %v306
    // Predicated region
    $region46: #{tpu_custom_call.1} parent=1 // pred_check
      _
    $region47: #{tpu_custom_call.1} parent=1 // pred_check_branch
      %311 = sbr.rel (0) target = $region49
    $region48: #{tpu_custom_call.1} parent=1 // pred_region
      %313 = vsyncadd [#allocation5], 0
      %s314 = sshll.u32 [#allocation9], 4
      %s315 = int_to_ptr.vmem [resolvable:$true] %s314
      %s316 = sshll.u32 %s7, 4
      %s317 = int_to_ptr.hbm [resolvable:$true] %s316
      %322 = dma.vmem_to_hbm [thread:$0]  %s315, 256, %s317, [#allocation5], 128, 128, 8
    $region49: #{tpu_custom_call.1} parent=1 // pred_fallthru
      _
    // Predicated region
    $region50: #{tpu_custom_call.1} parent=1 // pred_check
      _
    $region51: #{tpu_custom_call.1} parent=1 // pred_check_branch
      %324 = sbr.rel (0) target = $region53
    $region52: #{tpu_custom_call.1} parent=1 // pred_region
      %326 = dma.done [#allocation5], 256
    $region53: #{tpu_custom_call.1} parent=1 // pred_fallthru
      _
    %327 = vsyncpa [#allocation4], 1
    %328 = vsyncpa [#allocation7], 1
    %329 = vsyncpa [#allocation5], 1

</llo_original>
